<compile_context>
chip_gen: v7x
topology: tpu7x:2x2x1
jax: 0.10.0
libtpu: 0.0.40
codegen_flags: <defaults>
</compile_context>

<pallas_src>
import functools

import jax
import jax.numpy as jnp
from jax.experimental import pallas as pl
from jax.experimental.pallas import tpu as pltpu

IGNORE_INDEX = 255


def _ce_tile_kernel(logits_ref, tgt_ref, sum_ref, cnt_ref, sum_acc, cnt_acc, *,
                    ignore_index, num_classes, tile_h, h_total, need_row_mask):
    """One (image n, H-tile) grid step of masked cross-entropy.

    logits_ref: (1, C, TH, W)  logits tile (NCHW layout; W on lanes, TH on sublanes)
    tgt_ref:    (1, TH, W)     int32 targets tile
    sum_ref:    (1, 1, 1)      per-image f32 loss sum     (written at last H tile)
    cnt_ref:    (1, 1, 1)      per-image f32 valid count  (written at last H tile)
    sum_acc:    (TH, W) f32    VMEM accumulator (defers the XLU reduce)
    cnt_acc:    (TH, W) f32    VMEM accumulator
    """
    h_i = pl.program_id(1)

    @pl.when(h_i == 0)
    def _():
        sum_acc[...] = jnp.zeros_like(sum_acc)
        cnt_acc[...] = jnp.zeros_like(cnt_acc)

    t = tgt_ref[0]                                      # (TH, W) int32
    valid = t != ignore_index
    if need_row_mask:
        # Ragged last H tile: rows beyond H hold garbage from the partial block
        # DMA; mask them in-kernel instead of padding the logits in HBM.
        row = jax.lax.broadcasted_iota(jnp.int32, t.shape, 0) + h_i * tile_h
        valid = jnp.logical_and(valid, row < h_total)

    # Pass 1: per-pixel max over classes (numerical stability).  Plane-by-plane
    # along the leading C dim keeps everything rank-2 and VPU-only.
    m = logits_ref[0, 0].astype(jnp.float32)            # (TH, W)
    for cc in range(1, num_classes):
        m = jnp.maximum(m, logits_ref[0, cc].astype(jnp.float32))

    # Pass 2: exp-sum over classes + target-class logit via per-class-plane
    # compare/select (no MXU, no dynamic gather).
    s = jnp.zeros(t.shape, jnp.float32)
    tgt_logit = jnp.zeros(t.shape, jnp.float32)
    for cc in range(num_classes):
        xc = logits_ref[0, cc].astype(jnp.float32)      # (TH, W)
        s = s + jnp.exp(xc - m)
        tgt_logit = tgt_logit + jnp.where(t == cc, xc, 0.0)

    lse = jnp.log(s) + m
    per_pixel = jnp.where(valid, lse - tgt_logit, 0.0)

    sum_acc[...] = sum_acc[...] + per_pixel
    cnt_acc[...] = cnt_acc[...] + valid.astype(jnp.float32)

    @pl.when(h_i == pl.num_programs(1) - 1)
    def _():
        sum_ref[...] = jnp.broadcast_to(jnp.sum(sum_acc[...]), (1, 1, 1))
        cnt_ref[...] = jnp.broadcast_to(jnp.sum(cnt_acc[...]), (1, 1, 1))


def _choose_tile_h(c, h, w, itemsize, target_bytes=4 * 1024 * 1024):
    """Rows per H tile: ~target_bytes of logits per tile, multiple of 8 (or full H)."""
    rows = target_bytes // max(1, c * w * itemsize)
    rows = max(8, (rows // 8) * 8)
    if rows >= h:
        return h
    return int(rows)


def _ce_mean_single(logits_nchw, target_nhw, *, ignore_index=IGNORE_INDEX,
                    tile_h=None):
    """Mean cross-entropy over non-ignored pixels for one NCHW prediction."""
    n, c, h, w = logits_nchw.shape
    targets = target_nhw.astype(jnp.int32)
    itemsize = jnp.dtype(logits_nchw.dtype).itemsize

    if tile_h is None:
        tile_h = _choose_tile_h(c, h, w, itemsize)
    num_h_tiles = (h + tile_h - 1) // tile_h
    need_row_mask = (h % tile_h) != 0

    kernel = functools.partial(
        _ce_tile_kernel,
        ignore_index=ignore_index,
        num_classes=c,
        tile_h=tile_h,
        h_total=h,
        need_row_mask=need_row_mask,
    )

    # VMEM budget: double-buffered logits + target tiles, 2 accumulators, slack.
    # TODO(synk): for extreme C*W (e.g. >1000 classes at W >= 2048) also tile W.
    logits_tile = c * tile_h * w * itemsize
    tgt_tile = tile_h * w * 4
    acc_bytes = 2 * tile_h * w * 4
    vmem_limit = 2 * (logits_tile + tgt_tile) + acc_bytes + (4 << 20)
    vmem_limit = int(min(max(vmem_limit, 16 << 20), 56 << 20))

    loss_sum, valid_cnt = pl.pallas_call(
        kernel,
        out_shape=(jax.ShapeDtypeStruct((n, 1, 1), jnp.float32),
                   jax.ShapeDtypeStruct((n, 1, 1), jnp.float32)),
        grid_spec=pltpu.PrefetchScalarGridSpec(
            num_scalar_prefetch=0,
            grid=(n, num_h_tiles),
            in_specs=[
                pl.BlockSpec((1, c, tile_h, w), lambda ni, hi: (ni, 0, hi, 0)),
                pl.BlockSpec((1, tile_h, w), lambda ni, hi: (ni, hi, 0)),
            ],
            out_specs=[
                pl.BlockSpec((1, 1, 1), lambda ni, hi: (ni, 0, 0)),
                pl.BlockSpec((1, 1, 1), lambda ni, hi: (ni, 0, 0)),
            ],
            scratch_shapes=[
                pltpu.VMEM((tile_h, w), jnp.float32),
                pltpu.VMEM((tile_h, w), jnp.float32),
            ],
        ),
        compiler_params=pltpu.CompilerParams(
            dimension_semantics=("parallel", "arbitrary"),
            vmem_limit_bytes=vmem_limit,
        ),
    )(logits_nchw, targets)

    total = jnp.sum(loss_sum)
    count = jnp.sum(valid_cnt)
    # NOTE: PyTorch's CrossEntropyLoss returns NaN (0/0) when every pixel is
    # ignored; we clamp the denominator and return 0.0 in that degenerate case.
    return total / jnp.maximum(count, 1.0)


def seg_cross_entropy_loss(preds, target, *, ignore_index=IGNORE_INDEX,
                           ds_weights=None):
    """JAX/Pallas equivalent of SegCrossEntropyLoss.forward.

    preds: a single [N, C, H, W] array or a list of them (deep supervision).
    target: [N, H, W] int labels; ignore_index marks ignored pixels.
    """
    if not isinstance(preds, (list, tuple)):
        return _ce_mean_single(preds, target, ignore_index=ignore_index)

    loss = jnp.float32(0.0)
    for count, pred in enumerate(preds):
        if ds_weights is None or len(ds_weights) == 0:
            cur_weight = 1.0
        elif count > len(ds_weights) - 1:
            cur_weight = ds_weights[-1]
        else:
            cur_weight = ds_weights[count]
        loss = loss + cur_weight * _ce_mean_single(
            pred, target, ignore_index=ignore_index)
    return loss


def _reference(preds, target, ignore_index=IGNORE_INDEX, ds_weights=None):
    """Pure-JAX reference for sanity checking."""
    def single(pred):
        n, c, h, w = pred.shape
        logits = jnp.transpose(pred, (0, 2, 3, 1)).reshape(-1, c).astype(jnp.float32)
        t = target.reshape(-1).astype(jnp.int32)
        logp = jax.nn.log_softmax(logits, axis=-1)
        valid = t != ignore_index
        t_safe = jnp.where(valid, t, 0)
        nll = -jnp.take_along_axis(logp, t_safe[:, None], axis=-1)[:, 0]
        nll = jnp.where(valid, nll, 0.0)
        return jnp.sum(nll) / jnp.maximum(jnp.sum(valid.astype(jnp.float32)), 1.0)

    if not isinstance(preds, (list, tuple)):
        return single(preds)
    loss = 0.0
    for i, p in enumerate(preds):
        if ds_weights is None or len(ds_weights) == 0:
            w = 1.0
        elif i > len(ds_weights) - 1:
            w = ds_weights[-1]
        else:
            w = ds_weights[i]
        loss = loss + w * single(p)
    return loss


if __name__ == "__main__":
    key = jax.random.PRNGKey(0)
    N, C, H, W = 2, 4, 16, 16

    k1, k2, k3, k4, k5, k6 = jax.random.split(key, 6)
    pred0 = jax.random.normal(k1, (N, C, H, W), dtype=jnp.float32)
    pred1 = jax.random.normal(k2, (N, C, H, W), dtype=jnp.float32)
    target = jax.random.randint(k3, (N, H, W), 0, C, dtype=jnp.int32)
    # sprinkle some ignored pixels
    ignore_mask = jax.random.bernoulli(k4, 0.1, (N, H, W))
    target = jnp.where(ignore_mask, IGNORE_INDEX, target)

    ds_weights = [1.0, 0.4]
    preds = [pred0, pred1]

    loss = seg_cross_entropy_loss(preds, target, ds_weights=ds_weights)
    loss = jax.block_until_ready(loss)
    ref = _reference(preds, target, ds_weights=ds_weights)
    assert jnp.allclose(loss, ref, rtol=1e-5, atol=1e-5), (loss, ref)

    # Exercise the multi-H-tile + ragged-last-tile path with a forced small tile.
    H2 = 40
    pred2 = jax.random.normal(k5, (N, C, H2, W), dtype=jnp.float32)
    target2 = jax.random.randint(k6, (N, H2, W), 0, C, dtype=jnp.int32)
    target2 = jnp.where(jax.random.bernoulli(k4, 0.1, (N, H2, W)),
                        IGNORE_INDEX, target2)
    loss2 = jax.block_until_ready(_ce_mean_single(pred2, target2, tile_h=16))
    ref2 = _reference(pred2, target2)
    assert jnp.allclose(loss2, ref2, rtol=1e-5, atol=1e-5), (loss2, ref2)

    print("KERNEL_OK")
</pallas_src>

<mosaic_0001>
module attributes {stable_mosaic.version = 11 : i64} {
  func.func @_ce_tile_kernel(%arg0: i32, %arg1: i32, %arg2: memref<1x4x16x16xf32, #tpu.memory_space<vmem>>, %arg3: memref<1x16x16xi32, #tpu.memory_space<vmem>>, %arg4: memref<1x1x1xf32, #tpu.memory_space<vmem>>, %arg5: memref<1x1x1xf32, #tpu.memory_space<vmem>>, %arg6: memref<16x16xf32, #tpu.memory_space<vmem>>, %arg7: memref<16x16xf32, #tpu.memory_space<vmem>>) attributes {dimension_semantics = [#tpu.dimension_semantics<parallel>, #tpu.dimension_semantics<arbitrary>], iteration_bounds = array<i64: 2, 1>, scalar_prefetch = 0 : i64, scratch_operands = 2 : i64, tpu.core_type = #tpu.core_type<tc>, window_params = [{transform_indices = @transform_0, window_bounds = array<i64: 1, 4, 16, 16>}, {transform_indices = @transform_1, window_bounds = array<i64: 1, 16, 16>}, {transform_indices = @transform_2, window_bounds = array<i64: 1, 1, 1>}, {transform_indices = @transform_3, window_bounds = array<i64: 1, 1, 1>}]} {
    %c0_i32 = arith.constant 0 : i32
    %0 = arith.cmpi eq, %arg1, %c0_i32 : i32
    %1 = arith.extui %0 : i1 to i32
    %c0_i32_0 = arith.constant 0 : i32
    %2 = arith.cmpi ne, %1, %c0_i32_0 : i32
    scf.if %2 {
      %cst_49 = arith.constant 0.000000e+00 : f32
      %76 = vector.broadcast %cst_49 : f32 to vector<16x16xf32>
      %c0_50 = arith.constant 0 : index
      %c0_51 = arith.constant 0 : index
      %77 = vector.load %arg6[%c0_50, %c0_51] : memref<16x16xf32, #tpu.memory_space<vmem>>, vector<16x16xf32>
      tpu.vector_store %arg6[%c0_50, %c0_51], %76 {strides = array<i32>} : memref<16x16xf32, #tpu.memory_space<vmem>>, vector<16x16xf32>,
      %cst_52 = arith.constant 0.000000e+00 : f32
      %78 = vector.broadcast %cst_52 : f32 to vector<16x16xf32>
      %c0_53 = arith.constant 0 : index
      %c0_54 = arith.constant 0 : index
      %79 = vector.load %arg7[%c0_53, %c0_54] : memref<16x16xf32, #tpu.memory_space<vmem>>, vector<16x16xf32>
      tpu.vector_store %arg7[%c0_53, %c0_54], %78 {strides = array<i32>} : memref<16x16xf32, #tpu.memory_space<vmem>>, vector<16x16xf32>,
    } else {
    }
    %c0 = arith.constant 0 : index
    %c0_1 = arith.constant 0 : index
    %c0_2 = arith.constant 0 : index
    %3 = vector.load %arg3[%c0, %c0_1, %c0_2] : memref<1x16x16xi32, #tpu.memory_space<vmem>>, vector<1x16x16xi32>
    %4 = vector.shape_cast %3 : vector<1x16x16xi32> to vector<16x16xi32>
    %c255_i32 = arith.constant 255 : i32
    %5 = vector.broadcast %c255_i32 : i32 to vector<16x16xi32>
    %6 = arith.cmpi ne, %4, %5 : vector<16x16xi32>
    %c0_3 = arith.constant 0 : index
    %c0_4 = arith.constant 0 : index
    %c0_5 = arith.constant 0 : index
    %c0_6 = arith.constant 0 : index
    %7 = vector.load %arg2[%c0_3, %c0_4, %c0_5, %c0_6] : memref<1x4x16x16xf32, #tpu.memory_space<vmem>>, vector<1x1x16x16xf32>
    %8 = vector.shape_cast %7 : vector<1x1x16x16xf32> to vector<16x16xf32>
    %c0_7 = arith.constant 0 : index
    %c1 = arith.constant 1 : index
    %c0_8 = arith.constant 0 : index
    %c0_9 = arith.constant 0 : index
    %9 = vector.load %arg2[%c0_7, %c1, %c0_8, %c0_9] : memref<1x4x16x16xf32, #tpu.memory_space<vmem>>, vector<1x1x16x16xf32>
    %10 = vector.shape_cast %9 : vector<1x1x16x16xf32> to vector<16x16xf32>
    %11 = arith.maximumf %8, %10 : vector<16x16xf32>
    %c0_10 = arith.constant 0 : index
    %c2 = arith.constant 2 : index
    %c0_11 = arith.constant 0 : index
    %c0_12 = arith.constant 0 : index
    %12 = vector.load %arg2[%c0_10, %c2, %c0_11, %c0_12] : memref<1x4x16x16xf32, #tpu.memory_space<vmem>>, vector<1x1x16x16xf32>
    %13 = vector.shape_cast %12 : vector<1x1x16x16xf32> to vector<16x16xf32>
    %14 = arith.maximumf %11, %13 : vector<16x16xf32>
    %c0_13 = arith.constant 0 : index
    %c3 = arith.constant 3 : index
    %c0_14 = arith.constant 0 : index
    %c0_15 = arith.constant 0 : index
    %15 = vector.load %arg2[%c0_13, %c3, %c0_14, %c0_15] : memref<1x4x16x16xf32, #tpu.memory_space<vmem>>, vector<1x1x16x16xf32>
    %16 = vector.shape_cast %15 : vector<1x1x16x16xf32> to vector<16x16xf32>
    %17 = arith.maximumf %14, %16 : vector<16x16xf32>
    %cst = arith.constant 0.000000e+00 : f32
    %18 = vector.broadcast %cst : f32 to vector<16x16xf32>
    %cst_16 = arith.constant 0.000000e+00 : f32
    %19 = vector.broadcast %cst_16 : f32 to vector<16x16xf32>
    %c0_17 = arith.constant 0 : index
    %c0_18 = arith.constant 0 : index
    %c0_19 = arith.constant 0 : index
    %c0_20 = arith.constant 0 : index
    %20 = vector.load %arg2[%c0_17, %c0_18, %c0_19, %c0_20] : memref<1x4x16x16xf32, #tpu.memory_space<vmem>>, vector<1x1x16x16xf32>
    %21 = vector.shape_cast %20 : vector<1x1x16x16xf32> to vector<16x16xf32>
    %22 = arith.subf %21, %17 : vector<16x16xf32>
    %23 = math.exp %22 : vector<16x16xf32>
    %24 = arith.addf %18, %23 : vector<16x16xf32>
    %c0_i32_21 = arith.constant 0 : i32
    %25 = vector.broadcast %c0_i32_21 : i32 to vector<16x16xi32>
    %26 = arith.cmpi eq, %4, %25 : vector<16x16xi32>
    %cst_22 = arith.constant 0.000000e+00 : f32
    %27 = vector.broadcast %cst_22 : f32 to vector<16x16xf32>
    %28 = arith.select %26, %21, %27 : vector<16x16xi1>, vector<16x16xf32>
    %29 = arith.addf %19, %28 : vector<16x16xf32>
    %c0_23 = arith.constant 0 : index
    %c1_24 = arith.constant 1 : index
    %c0_25 = arith.constant 0 : index
    %c0_26 = arith.constant 0 : index
    %30 = vector.load %arg2[%c0_23, %c1_24, %c0_25, %c0_26] : memref<1x4x16x16xf32, #tpu.memory_space<vmem>>, vector<1x1x16x16xf32>
    %31 = vector.shape_cast %30 : vector<1x1x16x16xf32> to vector<16x16xf32>
    %32 = arith.subf %31, %17 : vector<16x16xf32>
    %33 = math.exp %32 : vector<16x16xf32>
    %34 = arith.addf %24, %33 : vector<16x16xf32>
    %c1_i32 = arith.constant 1 : i32
    %35 = vector.broadcast %c1_i32 : i32 to vector<16x16xi32>
    %36 = arith.cmpi eq, %4, %35 : vector<16x16xi32>
    %cst_27 = arith.constant 0.000000e+00 : f32
    %37 = vector.broadcast %cst_27 : f32 to vector<16x16xf32>
    %38 = arith.select %36, %31, %37 : vector<16x16xi1>, vector<16x16xf32>
    %39 = arith.addf %29, %38 : vector<16x16xf32>
    %c0_28 = arith.constant 0 : index
    %c2_29 = arith.constant 2 : index
    %c0_30 = arith.constant 0 : index
    %c0_31 = arith.constant 0 : index
    %40 = vector.load %arg2[%c0_28, %c2_29, %c0_30, %c0_31] : memref<1x4x16x16xf32, #tpu.memory_space<vmem>>, vector<1x1x16x16xf32>
    %41 = vector.shape_cast %40 : vector<1x1x16x16xf32> to vector<16x16xf32>
    %42 = arith.subf %41, %17 : vector<16x16xf32>
    %43 = math.exp %42 : vector<16x16xf32>
    %44 = arith.addf %34, %43 : vector<16x16xf32>
    %c2_i32 = arith.constant 2 : i32
    %45 = vector.broadcast %c2_i32 : i32 to vector<16x16xi32>
    %46 = arith.cmpi eq, %4, %45 : vector<16x16xi32>
    %cst_32 = arith.constant 0.000000e+00 : f32
    %47 = vector.broadcast %cst_32 : f32 to vector<16x16xf32>
    %48 = arith.select %46, %41, %47 : vector<16x16xi1>, vector<16x16xf32>
    %49 = arith.addf %39, %48 : vector<16x16xf32>
    %c0_33 = arith.constant 0 : index
    %c3_34 = arith.constant 3 : index
    %c0_35 = arith.constant 0 : index
    %c0_36 = arith.constant 0 : index
    %50 = vector.load %arg2[%c0_33, %c3_34, %c0_35, %c0_36] : memref<1x4x16x16xf32, #tpu.memory_space<vmem>>, vector<1x1x16x16xf32>
    %51 = vector.shape_cast %50 : vector<1x1x16x16xf32> to vector<16x16xf32>
    %52 = arith.subf %51, %17 : vector<16x16xf32>
    %53 = math.exp %52 : vector<16x16xf32>
    %54 = arith.addf %44, %53 : vector<16x16xf32>
    %c3_i32 = arith.constant 3 : i32
    %55 = vector.broadcast %c3_i32 : i32 to vector<16x16xi32>
    %56 = arith.cmpi eq, %4, %55 : vector<16x16xi32>
    %cst_37 = arith.constant 0.000000e+00 : f32
    %57 = vector.broadcast %cst_37 : f32 to vector<16x16xf32>
    %58 = arith.select %56, %51, %57 : vector<16x16xi1>, vector<16x16xf32>
    %59 = arith.addf %49, %58 : vector<16x16xf32>
    %60 = math.log %54 : vector<16x16xf32>
    %61 = arith.addf %60, %17 : vector<16x16xf32>
    %62 = arith.subf %61, %59 : vector<16x16xf32>
    %cst_38 = arith.constant 0.000000e+00 : f32
    %63 = vector.broadcast %cst_38 : f32 to vector<16x16xf32>
    %64 = arith.select %6, %62, %63 : vector<16x16xi1>, vector<16x16xf32>
    %c0_39 = arith.constant 0 : index
    %c0_40 = arith.constant 0 : index
    %65 = vector.load %arg6[%c0_39, %c0_40] : memref<16x16xf32, #tpu.memory_space<vmem>>, vector<16x16xf32>
    %66 = arith.addf %65, %64 : vector<16x16xf32>
    %c0_41 = arith.constant 0 : index
    %c0_42 = arith.constant 0 : index
    %67 = vector.load %arg6[%c0_41, %c0_42] : memref<16x16xf32, #tpu.memory_space<vmem>>, vector<16x16xf32>
    tpu.vector_store %arg6[%c0_41, %c0_42], %66 {strides = array<i32>} : memref<16x16xf32, #tpu.memory_space<vmem>>, vector<16x16xf32>,
    %c0_43 = arith.constant 0 : index
    %c0_44 = arith.constant 0 : index
    %68 = vector.load %arg7[%c0_43, %c0_44] : memref<16x16xf32, #tpu.memory_space<vmem>>, vector<16x16xf32>
    %69 = arith.extui %6 : vector<16x16xi1> to vector<16x16xi32>
    %70 = arith.sitofp %69 : vector<16x16xi32> to vector<16x16xf32>
    %71 = arith.addf %68, %70 : vector<16x16xf32>
    %c0_45 = arith.constant 0 : index
    %c0_46 = arith.constant 0 : index
    %72 = vector.load %arg7[%c0_45, %c0_46] : memref<16x16xf32, #tpu.memory_space<vmem>>, vector<16x16xf32>
    tpu.vector_store %arg7[%c0_45, %c0_46], %71 {strides = array<i32>} : memref<16x16xf32, #tpu.memory_space<vmem>>, vector<16x16xf32>,
    %c0_i32_47 = arith.constant 0 : i32
    %73 = arith.cmpi eq, %arg1, %c0_i32_47 : i32
    %74 = arith.extui %73 : i1 to i32
    %c0_i32_48 = arith.constant 0 : i32
    %75 = arith.cmpi ne, %74, %c0_i32_48 : i32
    scf.if %75 {
      %c0_49 = arith.constant 0 : index
      %c0_50 = arith.constant 0 : index
      %76 = vector.load %arg6[%c0_49, %c0_50] : memref<16x16xf32, #tpu.memory_space<vmem>>, vector<16x16xf32>
      %77 = vector.shape_cast %76 : vector<16x16xf32> to vector<1x16x16xf32>
      %cst_51 = arith.constant dense<0.000000e+00> : vector<1xf32>
      %78 = vector.multi_reduction <add>, %77, %cst_51 [1, 2] : vector<1x16x16xf32> to vector<1xf32>
      %79 = vector.shape_cast %78 : vector<1xf32> to vector<1x1x1xf32>
      %80 = vector.extract %79[0, 0, 0] : f32 from vector<1x1x1xf32>
      %81 = vector.broadcast %80 : f32 to vector<1x1x1xf32>
      %c0_52 = arith.constant 0 : index
      %c0_53 = arith.constant 0 : index
      %c0_54 = arith.constant 0 : index
      %82 = vector.load %arg4[%c0_52, %c0_53, %c0_54] : memref<1x1x1xf32, #tpu.memory_space<vmem>>, vector<1x1x1xf32>
      tpu.vector_store %arg4[%c0_52, %c0_53, %c0_54], %81 {strides = array<i32>} : memref<1x1x1xf32, #tpu.memory_space<vmem>>, vector<1x1x1xf32>,
      %c0_55 = arith.constant 0 : index
      %c0_56 = arith.constant 0 : index
      %83 = vector.load %arg7[%c0_55, %c0_56] : memref<16x16xf32, #tpu.memory_space<vmem>>, vector<16x16xf32>
      %84 = vector.shape_cast %83 : vector<16x16xf32> to vector<1x16x16xf32>
      %cst_57 = arith.constant dense<0.000000e+00> : vector<1xf32>
      %85 = vector.multi_reduction <add>, %84, %cst_57 [1, 2] : vector<1x16x16xf32> to vector<1xf32>
      %86 = vector.shape_cast %85 : vector<1xf32> to vector<1x1x1xf32>
      %87 = vector.extract %86[0, 0, 0] : f32 from vector<1x1x1xf32>
      %88 = vector.broadcast %87 : f32 to vector<1x1x1xf32>
      %c0_58 = arith.constant 0 : index
      %c0_59 = arith.constant 0 : index
      %c0_60 = arith.constant 0 : index
      %89 = vector.load %arg5[%c0_58, %c0_59, %c0_60] : memref<1x1x1xf32, #tpu.memory_space<vmem>>, vector<1x1x1xf32>
      tpu.vector_store %arg5[%c0_58, %c0_59, %c0_60], %88 {strides = array<i32>} : memref<1x1x1xf32, #tpu.memory_space<vmem>>, vector<1x1x1xf32>,
    } else {
    }
    return
  }
  func.func @transform_0(%arg0: i32, %arg1: i32) -> (i32, i32, i32, i32) {
    %c0_i32 = arith.constant 0 : i32
    %c0_i32_0 = arith.constant 0 : i32
    %c0_i32_1 = arith.constant 0 : i32
    return %arg0, %c0_i32, %arg1, %c0_i32_0 : i32, i32, i32, i32
  }
  func.func @transform_1(%arg0: i32, %arg1: i32) -> (i32, i32, i32) {
    %c0_i32 = arith.constant 0 : i32
    %c0_i32_0 = arith.constant 0 : i32
    return %arg0, %arg1, %c0_i32 : i32, i32, i32
  }
  func.func @transform_2(%arg0: i32, %arg1: i32) -> (i32, i32, i32) {
    %c0_i32 = arith.constant 0 : i32
    %c0_i32_0 = arith.constant 0 : i32
    %c0_i32_1 = arith.constant 0 : i32
    return %arg0, %c0_i32, %c0_i32_0 : i32, i32, i32
  }
  func.func @transform_3(%arg0: i32, %arg1: i32) -> (i32, i32, i32) {
    %c0_i32 = arith.constant 0 : i32
    %c0_i32_0 = arith.constant 0 : i32
    %c0_i32_1 = arith.constant 0 : i32
    return %arg0, %c0_i32, %c0_i32_0 : i32, i32, i32
  }
}

</mosaic_0001>

<llo_original>
// kernel: tpu_custom_call.1
$region0: #{tpu_custom_call.1}
  #allocation0 [shape = 'u32[]', space=smem, size = 0x4, offset = 0x4, fixed_abs, tag = 'smem constant byte address 0x4 - core index']
  #allocation1 [shape = 'u32[144,128]{1,0:T(1,128)}', space=vmem, size = 0x12000, scoped, tag = 'internal scratch']
  #allocation2 [shape = 'f32[16,16]{1,0:T(8,128)}', space=vmem, size = 0x2000, scoped, tag = 'scratch operand']
  #allocation3 [shape = 'f32[16,16]{1,0:T(8,128)}', space=vmem, size = 0x2000, scoped, tag = 'scratch operand']
  %s0 = inlined_call_operand.hbm [shape: f32[2,4,16,16], index: 0, kind: input, shape index: {}]
  %s1 = inlined_call_operand.hbm [shape: s32[2,16,16], index: 1, kind: input, shape index: {}]
  %s2 = inlined_call_operand.vmem [shape: f32[2,1,1], index: 2, kind: output, shape index: {0}]
  %s3 = inlined_call_operand.vmem [shape: f32[2,1,1], index: 3, kind: output, shape index: {1}]
  %4 = xla_tuple %s2, %s3
  %s5 = sld [smem:[#allocation0]]
  $region65: #{tpu_custom_call.1} parent=0
    _
  %s7 = ssub.s32 1, %s5
  %s8 = scalar_select 0, %s7, %s5
  $region1: #{tpu_custom_call.1} parent=0
    #allocation4 [shape = 'u8[65536]{0}', space=vmem, size = 0x10000, scoped, tag = 'input window, operand 0']
    #allocation5 [shape = 's32[2]{0}', space=sflag, size = 0x8, scoped, tag = 'scoped memory for tpu_custom_call.1']
    #allocation6 [shape = 'u8[16384]{0}', space=vmem, size = 0x4000, scoped, tag = 'input window, operand 1']
    #allocation7 [shape = 's32[2]{0}', space=sflag, size = 0x8, scoped, tag = 'scoped memory for tpu_custom_call.1']
    %9 = vsyncpa [#allocation5], 0
    %s10 = scalar_lea.sflag [#allocation5], 1
    %11 = vsyncpa %s10, 0
    %12 = vsyncpa [#allocation7], 0
    %s13 = scalar_lea.sflag [#allocation7], 1
    %14 = vsyncpa %s13, 0
    loop: start=0, step=1, limit=4
    $region2: #{tpu_custom_call.1} parent=1 // loop_pre_header
      _
    $region3: #{tpu_custom_call.1} parent=1 // loop_header
      %s16 = sphi 0, %s20
      %p17 = scmp.ge.s32.totalorder %s16, 4
      %s23 = sphi 0, %s35
      %s24 = sphi 0, %s31
      %s25 = sphi 0, %s23
      %s26 = sphi 0, %s24
      %s27 = sphi 0, %s25
      %s28 = sphi 0, %s26
      %s40 = sphi 0, %s42
      %s43 = sphi 0, %s40
      %s44 = sphi 0, %s43
      %s60 = sphi 0, %s44
      %s68 = sphi 0, %s70
      %s71 = sphi 0, %s68
      %s72 = sphi 0, %s71
      %s88 = sphi 0, %s72
      %s94 = sphi 0, %s96
      %s97 = sphi 0, %s94
      %s98 = sphi 0, %s97
      %s114 = sphi 0, %s98
      %s120 = sphi 0, %s122
      %s123 = sphi 0, %s120
      %s124 = sphi 0, %s123
      %s140 = sphi 0, %s124
    $region4: #{tpu_custom_call.1} parent=1 // loop_header_branch
      %19 = sbr.rel (%p17) target = $region8
    $region5: #{tpu_custom_call.1} parent=1 // loop_body
      %s21 = ssub.s32 %s16, 1
      %s22 = ssub.s32 %s16, 2
      %s29 = sadd.s32 1, %s24
      %p30 = scmp.ge.s32.totalorder %s29, 1
      %s31 = scalar_select %p30, 0, %s29
      %s32 = sadd.s32 1, %s23
      %s33 = scalar_select %p30, %s32, %s23
      %p34 = scmp.ge.s32.totalorder %s33, 2
      %s35 = scalar_select %p34, 0, %s33
      %s36 = ssub.s32 %s23, %s35
      %s37 = ssub.s32 %s24, %s31
      %s38 = sor.u32 %s36, %s37
      %p39 = scmp.eq.s32.totalorder %s38, 0
      %s41 = sadd.s32 %s40, 1
      %s42 = scalar_select %p39, %s40, %s41
      %p45 = pneg %p39
      %p46 = scmp.eq.s32.totalorder %s16, 1
      %p47 = por %p45, %p46
      %p48 = scmp.ne.s32.totalorder %s40, %s43
      %p49 = scmp.eq.s32.totalorder %s16, 0
      %p50 = por %p48, %p49
      %p51 = scmp.ne.s32.totalorder %s40, %s43
      %p52 = scmp.eq.s32.totalorder %s21, 1
      %p53 = por %p51, %p52
      %p54 = scmp.ne.s32.totalorder %s43, %s44
      %p55 = scmp.eq.s32.totalorder %s21, 0
      %p56 = por %p54, %p55
      %p57 = scmp.ne.s32.totalorder %s43, %s44
      %p58 = scmp.eq.s32.totalorder %s22, 1
      %p59 = por %p57, %p58
      %p61 = scmp.ne.s32.totalorder %s44, %s60
      %p62 = scmp.eq.s32.totalorder %s22, 0
      %p63 = por %p61, %p62
      %s64 = ssub.s32 %s23, %s35
      %s65 = ssub.s32 %s24, %s31
      %s66 = sor.u32 %s64, %s65
      %p67 = scmp.eq.s32.totalorder %s66, 0
      %s69 = sadd.s32 %s68, 1
      %s70 = scalar_select %p67, %s68, %s69
      %p73 = pneg %p67
      %p74 = scmp.eq.s32.totalorder %s16, 1
      %p75 = por %p73, %p74
      %p76 = scmp.ne.s32.totalorder %s68, %s71
      %p77 = scmp.eq.s32.totalorder %s16, 0
      %p78 = por %p76, %p77
      %p79 = scmp.ne.s32.totalorder %s68, %s71
      %p80 = scmp.eq.s32.totalorder %s21, 1
      %p81 = por %p79, %p80
      %p82 = scmp.ne.s32.totalorder %s71, %s72
      %p83 = scmp.eq.s32.totalorder %s21, 0
      %p84 = por %p82, %p83
      %p85 = scmp.ne.s32.totalorder %s71, %s72
      %p86 = scmp.eq.s32.totalorder %s22, 1
      %p87 = por %p85, %p86
      %p89 = scmp.ne.s32.totalorder %s72, %s88
      %p90 = scmp.eq.s32.totalorder %s22, 0
      %p91 = por %p89, %p90
      %s92 = ssub.s32 %s23, %s35
      %p93 = scmp.eq.s32.totalorder %s92, 0
      %s95 = sadd.s32 %s94, 1
      %s96 = scalar_select %p93, %s94, %s95
      %p99 = pneg %p93
      %p100 = scmp.eq.s32.totalorder %s16, 1
      %p101 = por %p99, %p100
      %p102 = scmp.ne.s32.totalorder %s94, %s97
      %p103 = scmp.eq.s32.totalorder %s16, 0
      %p104 = por %p102, %p103
      %p105 = scmp.ne.s32.totalorder %s94, %s97
      %p106 = scmp.eq.s32.totalorder %s21, 1
      %p107 = por %p105, %p106
      %p108 = scmp.ne.s32.totalorder %s97, %s98
      %p109 = scmp.eq.s32.totalorder %s21, 0
      %p110 = por %p108, %p109
      %p111 = scmp.ne.s32.totalorder %s97, %s98
      %p112 = scmp.eq.s32.totalorder %s22, 1
      %p113 = por %p111, %p112
      %p115 = scmp.ne.s32.totalorder %s98, %s114
      %p116 = scmp.eq.s32.totalorder %s22, 0
      %p117 = por %p115, %p116
      %s118 = ssub.s32 %s23, %s35
      %p119 = scmp.eq.s32.totalorder %s118, 0
      %s121 = sadd.s32 %s120, 1
      %s122 = scalar_select %p119, %s120, %s121
      %p125 = pneg %p119
      %p126 = scmp.eq.s32.totalorder %s16, 1
      %p127 = por %p125, %p126
      %p128 = scmp.ne.s32.totalorder %s120, %s123
      %p129 = scmp.eq.s32.totalorder %s16, 0
      %p130 = por %p128, %p129
      %p131 = scmp.ne.s32.totalorder %s120, %s123
      %p132 = scmp.eq.s32.totalorder %s21, 1
      %p133 = por %p131, %p132
      %p134 = scmp.ne.s32.totalorder %s123, %s124
      %p135 = scmp.eq.s32.totalorder %s21, 0
      %p136 = por %p134, %p135
      %p137 = scmp.ne.s32.totalorder %s123, %s124
      %p138 = scmp.eq.s32.totalorder %s22, 1
      %p139 = por %p137, %p138
      %p141 = scmp.ne.s32.totalorder %s124, %s140
      %p142 = scmp.eq.s32.totalorder %s22, 0
      %p143 = por %p141, %p142
      %p144 = scmp.le.s32.totalorder 1, %s16
      %p145 = scmp.lt.s32.totalorder %s16, 3
      %p146 = pnand %p144, %p145
      %p147 = pneg %p146
      // Predicated region
      $region9: #{tpu_custom_call.1} parent=5 // pred_check
        _
      $region10: #{tpu_custom_call.1} parent=5 // pred_check_branch
        %149 = sbr.rel (%p146) target = $region12
      $region11: #{tpu_custom_call.1} parent=5 // pred_region
        %s150 = ssub.s32 %s16, 1
      $region12: #{tpu_custom_call.1} parent=5 // pred_fallthru
        _
      %p151 = scmp.lt.s32.totalorder %s16, 2
      // Predicated region
      $region13: #{tpu_custom_call.1} parent=5 // pred_check
        %p152 = pneg %p151
      $region14: #{tpu_custom_call.1} parent=5 // pred_check_branch
        %154 = sbr.rel (%p152) target = $region16
      $region15: #{tpu_custom_call.1} parent=5 // pred_region
        // Predicated region
        $region17: #{tpu_custom_call.1} parent=15 // pred_check
          %p155 = pneg %p50
        $region18: #{tpu_custom_call.1} parent=15 // pred_check_branch
          %157 = sbr.rel (%p155) target = $region20
        $region19: #{tpu_custom_call.1} parent=15 // pred_region
          %s158 = sand.u32 %s40, 1
          %s159 = scalar_lea.sflag [#allocation5], %s158
          %s160 = sand.u32 %s40, 1
          %s161 = smul.addr %s160, 64
          %s162 = scalar_lea.vmem [#allocation4], %s161
          %s163 = smul.u32 2, %s24
          %s165 = ssub.s32 1024, 1024
          %166 = vsyncadd %s159, %s165
          %s167 = smul.addr %s23, 8
          %s168 = sadd.s32 %s163, %s167
          %s169 = smul.addr %s168, 128
          %s170 = scalar_lea.hbm %s0, %s169
          %s171 = sshll.u32 %s162, 4
          %s172 = int_to_ptr.vmem [resolvable:$true] %s171
          %177 = dma.hbm_to_vmem [thread:$0]  %s170, 1024, %s172, %s159, 128, 128, 8
        $region20: #{tpu_custom_call.1} parent=15 // pred_fallthru
          _
        // Predicated region
        $region21: #{tpu_custom_call.1} parent=15 // pred_check
          %p178 = pneg %p78
        $region22: #{tpu_custom_call.1} parent=15 // pred_check_branch
          %180 = sbr.rel (%p178) target = $region24
        $region23: #{tpu_custom_call.1} parent=15 // pred_region
          %s181 = sand.u32 %s68, 1
          %s182 = scalar_lea.sflag [#allocation7], %s181
          %s183 = sand.u32 %s68, 1
          %s184 = smul.addr %s183, 16
          %s185 = scalar_lea.vmem [#allocation6], %s184
          %s186 = smul.u32 2, %s24
          %s188 = ssub.s32 256, 256
          %189 = vsyncadd %s182, %s188
          %s190 = smul.addr %s23, 2
          %s191 = sadd.s32 %s186, %s190
          %s192 = smul.addr %s191, 128
          %s193 = scalar_lea.hbm %s1, %s192
          %s194 = sshll.u32 %s185, 4
          %s195 = int_to_ptr.vmem [resolvable:$true] %s194
          %200 = dma.hbm_to_vmem [thread:$0]  %s193, 256, %s195, %s182, 128, 128, 8
        $region24: #{tpu_custom_call.1} parent=15 // pred_fallthru
          _
      $region16: #{tpu_custom_call.1} parent=5 // pred_fallthru
        _
      %p201 = scmp.le.s32.totalorder 1, %s16
      %p202 = scmp.lt.s32.totalorder %s16, 3
      %p203 = pnand %p201, %p202
      %p204 = pneg %p203
      // Predicated region
      $region25: #{tpu_custom_call.1} parent=5 // pred_check
        _
      $region26: #{tpu_custom_call.1} parent=5 // pred_check_branch
        %206 = sbr.rel (%p203) target = $region28
      $region27: #{tpu_custom_call.1} parent=5 // pred_region
        %s207 = ssub.s32 %s16, 1
        %s208 = sand.u32 %s43, 1
        %s209 = scalar_lea.sflag [#allocation5], %s208
        %s210 = sand.u32 %s43, 1
        %s211 = smul.addr %s210, 64
        %s212 = scalar_lea.vmem [#allocation4], %s211
        // Predicated region
        $region29: #{tpu_custom_call.1} parent=27 // pred_check
          %p213 = pneg %p56
        $region30: #{tpu_custom_call.1} parent=27 // pred_check_branch
          %215 = sbr.rel (%p213) target = $region32
        $region31: #{tpu_custom_call.1} parent=27 // pred_region
          %216 = dma.done %s209, 1024
        $region32: #{tpu_custom_call.1} parent=27 // pred_fallthru
          _
        %s217 = sand.u32 %s71, 1
        %s218 = scalar_lea.sflag [#allocation7], %s217
        %s219 = sand.u32 %s71, 1
        %s220 = smul.addr %s219, 16
        %s221 = scalar_lea.vmem [#allocation6], %s220
        // Predicated region
        $region33: #{tpu_custom_call.1} parent=27 // pred_check
          %p222 = pneg %p84
        $region34: #{tpu_custom_call.1} parent=27 // pred_check_branch
          %224 = sbr.rel (%p222) target = $region36
        $region35: #{tpu_custom_call.1} parent=27 // pred_region
          %225 = dma.done %s218, 256
        $region36: #{tpu_custom_call.1} parent=27 // pred_fallthru
          _
        %s226 = sand.u32 %s43, 1
        %s227 = scalar_lea.sflag [#allocation5], %s226
        %s228 = sand.u32 %s43, 1
        %s229 = smul.addr %s228, 64
        %s230 = scalar_lea.vmem [#allocation4], %s229
        %p231 = pneg %p56
        %p232 = pneg %p53
        %s233 = sand.u32 %s71, 1
        %s234 = scalar_lea.sflag [#allocation7], %s233
        %s235 = sand.u32 %s71, 1
        %s236 = smul.addr %s235, 16
        %s237 = scalar_lea.vmem [#allocation6], %s236
        %p238 = pneg %p84
        %p239 = pneg %p81
        %p240 = pneg %p110
        %p241 = pneg %p107
        %p242 = scmp.lt.s32.totalorder %s25, 1
        %s243 = scalar_select %p242, %s25, 1
        %s244 = scalar_lea.vmem %s2, %s243
        %p245 = pneg %p136
        %p246 = pneg %p133
        %p247 = scmp.lt.s32.totalorder %s25, 1
        %s248 = scalar_select %p247, %s25, 1
        %s249 = scalar_lea.vmem %s3, %s248
        %s250 = smul.u32 2, %s26
        %s251 = smul.u32 2, %s26
        %p252 = scmp.lt.s32.totalorder %s25, 1
        %s253 = scalar_select %p252, %s25, 1
        %s254 = scalar_lea.vmem %s2, %s253
        %p255 = scmp.lt.s32.totalorder %s25, 1
        %s256 = scalar_select %p255, %s25, 1
        %s257 = scalar_lea.vmem %s3, %s256
        %p258 = scmp.eq.s32.totalorder %s26, 0
        // Predicated region
        $region37: #{tpu_custom_call.1} parent=27 // pred_check
          %p259 = pneg %p258
        $region38: #{tpu_custom_call.1} parent=27 // pred_check_branch
          %261 = sbr.rel (%p259) target = $region40
        $region39: #{tpu_custom_call.1} parent=27 // pred_region
          %vm262 = vcmask 130048
          %263 = vst.msk [vmem:[#allocation2] sm:$0xff] %vm262, 0.0
          %264 = vst.msk [vmem:[#allocation2 + $0x8] sm:$0xff] %vm262, 0.0
          %265 = vst.msk [vmem:[#allocation3] sm:$0xff] %vm262, 0.0
          %266 = vst.msk [vmem:[#allocation3 + $0x8] sm:$0xff] %vm262, 0.0
        $region40: #{tpu_custom_call.1} parent=27 // pred_fallthru
          _
        %v267 = vld [vmem:[%s221] sm:$0xff]
        %v268 = vld [vmem:[%s221 + $0x8] sm:$0xff]
        %vm269 = vcmp.ne.s32.totalorder %v267, 255
        %vm270 = vcmp.ne.s32.totalorder %v268, 255
        %v271 = vld [vmem:[%s212] sm:$0xff]
        %v272 = vld [vmem:[%s212 + $0x8] sm:$0xff]
        %s273 = scalar_lea.vmem %s212, 16 [#allocation4]
        %v274 = vld [vmem:[%s273] sm:$0xff]
        %v275 = vld [vmem:[%s273 + $0x8] sm:$0xff]
        %v276 = vmax.f32 %v271, %v274
        %v277 = vmax.f32 %v272, %v275
        %s278 = scalar_lea.vmem %s212, 32 [#allocation4]
        %v279 = vld [vmem:[%s278] sm:$0xff]
        %v280 = vld [vmem:[%s278 + $0x8] sm:$0xff]
        %v281 = vmax.f32 %v276, %v279
        %v282 = vmax.f32 %v277, %v280
        %s283 = scalar_lea.vmem %s212, 48 [#allocation4]
        %v284 = vld [vmem:[%s283] sm:$0xff]
        %v285 = vld [vmem:[%s283 + $0x8] sm:$0xff]
        %v286 = vmax.f32 %v281, %v284
        %v287 = vmax.f32 %v282, %v285
        %v288 = vsub.f32 %v271, %v286
        %v289 = vsub.f32 %v272, %v287
        %v290 = vmul.f32 %v288, 1.442695
        %v291 = vpow.pop %v290
        %v292 = vmul.f32 %v289, 1.442695
        %v293 = vpow.pop %v292
        %v294 = vadd.f32 %v291, 0.0
        %v295 = vadd.f32 %v293, 0.0
        %vm296 = vcmp.eq.s32.totalorder %v267, 0
        %vm297 = vcmp.eq.s32.totalorder %v268, 0
        %v298 = vsel %vm296, %v271, 0.0
        %v299 = vsel %vm297, %v272, 0.0
        %v300 = vadd.f32 %v298, 0.0
        %v301 = vadd.f32 %v299, 0.0
        %v302 = vsub.f32 %v274, %v286
        %v303 = vsub.f32 %v275, %v287
        %v304 = vmul.f32 %v302, 1.442695
        %v305 = vpow.pop %v304
        %v306 = vmul.f32 %v303, 1.442695
        %v307 = vpow.pop %v306
        %v308 = vadd.f32 %v294, %v305
        %v309 = vadd.f32 %v295, %v307
        %vm310 = vcmp.eq.s32.totalorder %v267, 1
        %vm311 = vcmp.eq.s32.totalorder %v268, 1
        %v312 = vsel %vm310, %v274, 0.0
        %v313 = vsel %vm311, %v275, 0.0
        %v314 = vadd.f32 %v300, %v312
        %v315 = vadd.f32 %v301, %v313
        %v316 = vsub.f32 %v279, %v286
        %v317 = vsub.f32 %v280, %v287
        %v318 = vmul.f32 %v316, 1.442695
        %v319 = vpow.pop %v318
        %v320 = vmul.f32 %v317, 1.442695
        %v321 = vpow.pop %v320
        %v322 = vadd.f32 %v308, %v319
        %v323 = vadd.f32 %v309, %v321
        %vm324 = vcmp.eq.s32.totalorder %v267, 2
        %vm325 = vcmp.eq.s32.totalorder %v268, 2
        %v326 = vsel %vm324, %v279, 0.0
        %v327 = vsel %vm325, %v280, 0.0
        %v328 = vadd.f32 %v314, %v326
        %v329 = vadd.f32 %v315, %v327
        %v330 = vsub.f32 %v284, %v286
        %v331 = vsub.f32 %v285, %v287
        %v332 = vmul.f32 %v330, 1.442695
        %v333 = vpow.pop %v332
        %v334 = vmul.f32 %v331, 1.442695
        %v335 = vpow.pop %v334
        %v336 = vadd.f32 %v322, %v333
        %v337 = vadd.f32 %v323, %v335
        %vm338 = vcmp.eq.s32.totalorder %v267, 3
        %vm339 = vcmp.eq.s32.totalorder %v268, 3
        %v340 = vsel %vm338, %v284, 0.0
        %v341 = vsel %vm339, %v285, 0.0
        %v342 = vadd.f32 %v328, %v340
        %v343 = vadd.f32 %v329, %v341
        %v344 = vlog2.pop %v336
        %v345 = vmul.f32 %v344, 0.6931472
        %v346 = vlog2.pop %v337
        %v347 = vmul.f32 %v346, 0.6931472
        %v348 = vadd.f32 %v345, %v286
        %v349 = vadd.f32 %v347, %v287
        %v350 = vsub.f32 %v348, %v342
        %v351 = vsub.f32 %v349, %v343
        %v352 = vsel %vm269, %v350, 0.0
        %v353 = vsel %vm270, %v351, 0.0
        %v354 = vld [vmem:[#allocation2] sm:$0xff]
        %v355 = vld [vmem:[#allocation2 + $0x8] sm:$0xff]
        %v356 = vadd.f32 %v354, %v352
        %v357 = vadd.f32 %v355, %v353
        %vm358 = vcmask 130048
        %359 = vst.msk [vmem:[#allocation2] sm:$0xff] %vm358, %v356
        %360 = vst.msk [vmem:[#allocation2 + $0x8] sm:$0xff] %vm358, %v357
        %v361 = vld [vmem:[#allocation3] sm:$0xff]
        %v362 = vld [vmem:[#allocation3 + $0x8] sm:$0xff]
        %v363 = vsel %vm269, 1, 0
        %v364 = vsel %vm270, 1, 0
        %v365 = vcvt.s32.f32 %v363
        %v366 = vcvt.s32.f32 %v364
        %v367 = vadd.f32 %v361, %v365
        %v368 = vadd.f32 %v362, %v366
        %369 = vst.msk [vmem:[#allocation3] sm:$0xff] %vm358, %v367
        %370 = vst.msk [vmem:[#allocation3 + $0x8] sm:$0xff] %vm358, %v368
        // Predicated region
        $region41: #{tpu_custom_call.1} parent=27 // pred_check
          %p371 = pneg %p258
        $region42: #{tpu_custom_call.1} parent=27 // pred_check_branch
          %373 = sbr.rel (%p371) target = $region44
        $region43: #{tpu_custom_call.1} parent=27 // pred_region
          %v374 = vld [vmem:[#allocation2] sm:$0xff]
          %v375 = vld [vmem:[#allocation2 + $0x8] sm:$0xff]
          %v376 = vsel %vm358, %v374, 0.0
          %v377 = vsel %vm358, %v375, 0.0
          %v378 = vadd.f32 %v376, %v377
          %379 = vadd.xlane.f32.xlu0 %v378
          %v380 = vpop.xlane.xlu0 %379
          %v381 = vrot.slane %v380, 4
          %v382 = vadd.f32 %v380, %v381
          %v383 = vrot.slane %v382, 2
          %v384 = vadd.f32 %v382, %v383
          %v385 = vrot.slane %v384, 1
          %v386 = vadd.f32 %v384, %v385
          %s387 = vtos %v386
          %v388 = vstv %s387
          %vm389 = vcmask 0
          %390 = vst.msk [vmem:[%s254] sm:$0x1] %vm389, %v388
          %v391 = vld [vmem:[#allocation3] sm:$0xff]
          %v392 = vld [vmem:[#allocation3 + $0x8] sm:$0xff]
          %v393 = vsel %vm358, %v391, 0.0
          %v394 = vsel %vm358, %v392, 0.0
          %v395 = vadd.f32 %v393, %v394
          %396 = vadd.xlane.f32.xlu0 %v395
          %v397 = vpop.xlane.xlu0 %396
          %v398 = vrot.slane %v397, 4
          %v399 = vadd.f32 %v397, %v398
          %v400 = vrot.slane %v399, 2
          %v401 = vadd.f32 %v399, %v400
          %v402 = vrot.slane %v401, 1
          %v403 = vadd.f32 %v401, %v402
          %s404 = vtos %v403
          %v405 = vstv %s404
          %406 = vst.msk [vmem:[%s257] sm:$0x1] %vm389, %v405
        $region44: #{tpu_custom_call.1} parent=27 // pred_fallthru
          _
        %p407 = scmp.lt.s32.totalorder %s25, 1
        %s408 = scalar_select %p407, %s25, 1
        %s409 = scalar_lea.vmem %s2, %s408
        %p410 = scmp.lt.s32.totalorder %s25, 1
        %s411 = scalar_select %p410, %s25, 1
        %s412 = scalar_lea.vmem %s3, %s411
        // Predicated region
        $region45: #{tpu_custom_call.1} parent=27 // pred_check
          %p413 = pneg %p107
        $region46: #{tpu_custom_call.1} parent=27 // pred_check_branch
          %415 = sbr.rel (%p413) target = $region48
        $region47: #{tpu_custom_call.1} parent=27 // pred_region
          _
        $region48: #{tpu_custom_call.1} parent=27 // pred_fallthru
          _
        // Predicated region
        $region49: #{tpu_custom_call.1} parent=27 // pred_check
          %p416 = pneg %p133
        $region50: #{tpu_custom_call.1} parent=27 // pred_check_branch
          %418 = sbr.rel (%p416) target = $region52
        $region51: #{tpu_custom_call.1} parent=27 // pred_region
          _
        $region52: #{tpu_custom_call.1} parent=27 // pred_fallthru
          _
      $region28: #{tpu_custom_call.1} parent=5 // pred_fallthru
        _
      %p419 = scmp.le.s32.totalorder 2, %s16
      // Predicated region
      $region53: #{tpu_custom_call.1} parent=5 // pred_check
        %p420 = pneg %p419
      $region54: #{tpu_custom_call.1} parent=5 // pred_check_branch
        %422 = sbr.rel (%p420) target = $region56
      $region55: #{tpu_custom_call.1} parent=5 // pred_region
        %s423 = ssub.s32 %s16, 2
        // Predicated region
        $region57: #{tpu_custom_call.1} parent=55 // pred_check
          %p424 = pneg %p113
        $region58: #{tpu_custom_call.1} parent=55 // pred_check_branch
          %426 = sbr.rel (%p424) target = $region60
        $region59: #{tpu_custom_call.1} parent=55 // pred_region
          %p427 = scmp.lt.s32.totalorder %s27, 1
          %s428 = scalar_select %p427, %s27, 1
          %s429 = scalar_lea.vmem %s2, %s428
        $region60: #{tpu_custom_call.1} parent=55 // pred_fallthru
          _
        // Predicated region
        $region61: #{tpu_custom_call.1} parent=55 // pred_check
          %p430 = pneg %p139
        $region62: #{tpu_custom_call.1} parent=55 // pred_check_branch
          %432 = sbr.rel (%p430) target = $region64
        $region63: #{tpu_custom_call.1} parent=55 // pred_region
          %p433 = scmp.lt.s32.totalorder %s27, 1
          %s434 = scalar_select %p433, %s27, 1
          %s435 = scalar_lea.vmem %s3, %s434
        $region64: #{tpu_custom_call.1} parent=55 // pred_fallthru
          _
      $region56: #{tpu_custom_call.1} parent=5 // pred_fallthru
        _
    $region6: #{tpu_custom_call.1} parent=1 // loop_footer
      %s20 = sadd.s32 1, %s16
    $region7: #{tpu_custom_call.1} parent=1 // loop_footer_branch
      %15 = sbr.rel target = $region3
    $region8: #{tpu_custom_call.1} parent=1 // loop_exit
      _
    %436 = vsyncpa [#allocation5], 1
    %s437 = scalar_lea.sflag [#allocation5], 1
    %438 = vsyncpa %s437, 1
    %439 = vsyncpa [#allocation7], 1
    %s440 = scalar_lea.sflag [#allocation7], 1
    %441 = vsyncpa %s440, 1

</llo_original>
